<compile_context>
chip_gen: v5e
topology: v5e:2x2
jax: 0.10.0
libtpu: 0.0.40
codegen_flags: <defaults>
</compile_context>

<pallas_src>
import functools

import jax
import jax.numpy as jnp
from jax.experimental import pallas as pl
from jax.experimental.pallas import tpu as pltpu


def _round_up(x, m):
    return ((x + m - 1) // m) * m


def _pick_tile(n_pad, cap):
    """Largest multiple of 128 that is <= cap and divides n_pad."""
    t = min(cap, n_pad)
    t -= t % 128
    while n_pad % t != 0:
        t -= 128
    return t


# --------------------------------------------------------------------------
# Kernel 1: support = X @ W  (hoisted; tiled over node rows)
# --------------------------------------------------------------------------
def _xw_kernel(x_ref, w_ref, o_ref):
    o_ref[...] = jnp.dot(
        x_ref[...], w_ref[...], preferred_element_type=jnp.float32
    )


# --------------------------------------------------------------------------
# Kernel 2: out = maybe_relu( adj @ support + b )  (tiled, K-reduction last)
# --------------------------------------------------------------------------
def _agg_kernel(adj_ref, s_ref, b_ref, o_ref, acc_ref, *, apply_relu):
    k = pl.program_id(1)

    @pl.when(k == 0)
    def _():
        acc_ref[...] = jnp.zeros_like(acc_ref)

    acc_ref[...] += jnp.dot(
        adj_ref[...], s_ref[...], preferred_element_type=jnp.float32
    )

    @pl.when(k == pl.num_programs(1) - 1)
    def _():
        out = acc_ref[...] + b_ref[...]  # bias broadcast over node rows
        if apply_relu:
            out = jnp.maximum(out, 0.0)
        o_ref[...] = out.astype(o_ref.dtype)


def gcn_layer(x_pad, adj_pad, w, b, *, tm, tk, apply_relu):
    """One GraphConvolution layer on padded operands.

    x_pad:   (N_PAD, F_in)    zero-padded node features (F_in may exceed w rows)
    adj_pad: (N_PAD, N_PAD)   zero-padded normalized adjacency
    w:       (f_in, f_out), b: (f_out,)
    returns  (N_PAD, F_OUT_PAD) with f_out zero-padded to a multiple of 128.
    """
    n_pad, f_in_x = x_pad.shape
    f_in_w, f_out = w.shape
    f_out_pad = _round_up(f_out, 128)

    # Pad weight rows to match x_pad's (possibly lane-padded) feature dim and
    # pad weight columns / bias to a lane-dense multiple of 128.
    w_pad = jnp.zeros((f_in_x, f_out_pad), jnp.float32)
    w_pad = w_pad.at[:f_in_w, :f_out].set(w)
    b_pad = jnp.zeros((1, f_out_pad), jnp.float32).at[0, :f_out].set(b)

    # ---- support = X @ W (small, computed once, tiled over node rows) ----
    support = pl.pallas_call(
        _xw_kernel,
        out_shape=jax.ShapeDtypeStruct((n_pad, f_out_pad), jnp.float32),
        grid=(n_pad // tk,),
        in_specs=[
            pl.BlockSpec((tk, f_in_x), lambda i: (i, 0)),
            pl.BlockSpec((f_in_x, f_out_pad), lambda i: (0, 0)),
        ],
        out_specs=pl.BlockSpec((tk, f_out_pad), lambda i: (i, 0)),
        compiler_params=pltpu.CompilerParams(
            dimension_semantics=("parallel",)
        ),
    )(x_pad, w_pad)

    # ---- out = adj @ support + b (pipelined over adj tiles) ----
    cost = pl.CostEstimate(
        flops=2 * n_pad * n_pad * f_out_pad,
        transcendentals=0,
        bytes_accessed=4 * (n_pad * n_pad + 2 * n_pad * f_out_pad + f_out_pad),
    )
    kernel = functools.partial(_agg_kernel, apply_relu=apply_relu)
    out = pl.pallas_call(
        kernel,
        out_shape=jax.ShapeDtypeStruct((n_pad, f_out_pad), jnp.float32),
        grid=(n_pad // tm, n_pad // tk),
        in_specs=[
            pl.BlockSpec((tm, tk), lambda i, k: (i, k)),          # adj tile
            pl.BlockSpec((tk, f_out_pad), lambda i, k: (k, 0)),   # support tile
            pl.BlockSpec((1, f_out_pad), lambda i, k: (0, 0)),    # bias
        ],
        out_specs=pl.BlockSpec((tm, f_out_pad), lambda i, k: (i, 0)),
        scratch_shapes=[pltpu.VMEM((tm, f_out_pad), jnp.float32)],
        compiler_params=pltpu.CompilerParams(
            dimension_semantics=("parallel", "arbitrary")
        ),
        cost_estimate=cost,
    )(adj_pad, support, b_pad)
    return out


def gcn_forward(x, adj, params):
    """GCN.forward in inference mode (dropout == identity)."""
    # TODO(synk): dropout is only active when training=True; inference path is identity.
    n, _ = x.shape
    nclass = params["w2"].shape[1]

    n_pad = _round_up(n, 128)
    tm = _pick_tile(n_pad, 256)   # row tile (sized well under v7x's 64 MiB VMEM)
    tk = _pick_tile(n_pad, 512)   # reduction tile over adj columns

    # Zero-pad adjacency and features once; padded rows/cols contribute nothing
    # to the valid output rows (they are sliced off at the end).
    adj_pad = jnp.zeros((n_pad, n_pad), jnp.float32).at[:n, :n].set(adj)
    x_pad = jnp.zeros((n_pad, x.shape[1]), jnp.float32).at[:n, :].set(x)

    h_pad = gcn_layer(x_pad, adj_pad, params["w1"], params["b1"],
                      tm=tm, tk=tk, apply_relu=True)
    out_pad = gcn_layer(h_pad, adj_pad, params["w2"], params["b2"],
                        tm=tm, tk=tk, apply_relu=False)
    return out_pad[:n, :nclass]


def aug_normalized_adjacency(adj):
    """D^-1/2 (A + I) D^-1/2, dense JAX version of the scipy reference."""
    n = adj.shape[0]
    adj = adj + jnp.eye(n, dtype=adj.dtype)
    row_sum = jnp.sum(adj, axis=1)
    d_inv_sqrt = jnp.power(row_sum, -0.5)
    d_inv_sqrt = jnp.where(jnp.isinf(d_inv_sqrt), 0.0, d_inv_sqrt)
    return (adj * d_inv_sqrt[:, None]) * d_inv_sqrt[None, :]


def init_params(key, nfeat, nhid, nclass):
    """Deterministic init mirroring GraphConvolution: U(-stdv, stdv), stdv = 1/sqrt(out)."""
    k1, k2, k3, k4 = jax.random.split(key, 4)
    s1 = 1.0 / jnp.sqrt(jnp.float32(nhid))
    s2 = 1.0 / jnp.sqrt(jnp.float32(nclass))
    return {
        "w1": jax.random.uniform(k1, (nfeat, nhid), jnp.float32, -s1, s1),
        "b1": jax.random.uniform(k2, (nhid,), jnp.float32, -s1, s1),
        "w2": jax.random.uniform(k3, (nhid, nclass), jnp.float32, -s2, s2),
        "b2": jax.random.uniform(k4, (nclass,), jnp.float32, -s2, s2),
    }


if __name__ == "__main__":
    N, NFEAT, NHID, NCLASS = 128, 64, 32, 16

    key = jax.random.PRNGKey(0)
    k_feat, k_adj, k_params = jax.random.split(key, 3)

    # Node features
    x = jax.random.normal(k_feat, (N, NFEAT), dtype=jnp.float32)

    # Random symmetric binary graph -> normalized adjacency
    raw = jax.random.uniform(k_adj, (N, N)) < 0.05
    a = jnp.logical_or(raw, raw.T).astype(jnp.float32)
    a = a * (1.0 - jnp.eye(N, dtype=jnp.float32))  # no self loops (added in normalization)
    adj = aug_normalized_adjacency(a)

    params = init_params(k_params, NFEAT, NHID, NCLASS)

    out = jax.jit(gcn_forward)(x, adj, params)
    out = jax.block_until_ready(out)

    # Pure-JAX reference check
    ref_h = jnp.maximum(adj @ (x @ params["w1"]) + params["b1"], 0.0)
    ref = adj @ (ref_h @ params["w2"]) + params["b2"]
    assert out.shape == (N, NCLASS)
    assert jnp.allclose(out, ref, atol=1e-4, rtol=1e-4)

    print("KERNEL_OK")
</pallas_src>

<mosaic_0001>
module attributes {stable_mosaic.version = 11 : i64} {
  func.func @_xw_kernel(%arg0: i32, %arg1: memref<128x64xf32, #tpu.memory_space<vmem>>, %arg2: memref<64x128xf32, #tpu.memory_space<vmem>>, %arg3: memref<128x128xf32, #tpu.memory_space<vmem>>) attributes {dimension_semantics = [#tpu.dimension_semantics<parallel>], iteration_bounds = array<i64: 1>, scalar_prefetch = 0 : i64, scratch_operands = 0 : i64, tpu.core_type = #tpu.core_type<tc>, window_params = [{transform_indices = @transform_0, window_bounds = array<i64: 128, 64>}, {pipeline_mode = #tpu.pipeline_mode<synchronous>, transform_indices = @transform_1, window_bounds = array<i64: 64, 128>}, {transform_indices = @transform_2, window_bounds = array<i64: 128, 128>}]} {
    %c0 = arith.constant 0 : index
    %c0_0 = arith.constant 0 : index
    %0 = vector.load %arg1[%c0, %c0_0] : memref<128x64xf32, #tpu.memory_space<vmem>>, vector<128x64xf32>
    %c0_1 = arith.constant 0 : index
    %c0_2 = arith.constant 0 : index
    %1 = vector.load %arg2[%c0_1, %c0_2] : memref<64x128xf32, #tpu.memory_space<vmem>>, vector<64x128xf32>
    %cst = arith.constant dense<0.000000e+00> : vector<128x128xf32>
    %2 = tpu.matmul %0, %1, %cst {dimension_numbers = #tpu.dot_dimension_numbers<[1], [0], [0], [1], [0, 0, 1, 1], [], []>} : vector<128x64xf32>, vector<64x128xf32>, vector<128x128xf32> -> vector<128x128xf32>
    %c0_3 = arith.constant 0 : index
    %c0_4 = arith.constant 0 : index
    %3 = vector.load %arg3[%c0_3, %c0_4] : memref<128x128xf32, #tpu.memory_space<vmem>>, vector<128x128xf32>
    tpu.vector_store %arg3[%c0_3, %c0_4], %2 {strides = array<i32>} : memref<128x128xf32, #tpu.memory_space<vmem>>, vector<128x128xf32>,
    return
  }
  func.func @transform_0(%arg0: i32) -> (i32, i32) {
    %c0_i32 = arith.constant 0 : i32
    %c0_i32_0 = arith.constant 0 : i32
    return %arg0, %c0_i32 : i32, i32
  }
  func.func @transform_1(%arg0: i32) -> (i32, i32) {
    %c0_i32 = arith.constant 0 : i32
    %c0_i32_0 = arith.constant 0 : i32
    %c0_i32_1 = arith.constant 0 : i32
    return %c0_i32, %c0_i32_0 : i32, i32
  }
  func.func @transform_2(%arg0: i32) -> (i32, i32) {
    %c0_i32 = arith.constant 0 : i32
    %c0_i32_0 = arith.constant 0 : i32
    return %arg0, %c0_i32 : i32, i32
  }
}

module attributes {stable_mosaic.version = 11 : i64} {
  func.func @_agg_kernel(%arg0: i32, %arg1: i32, %arg2: memref<128x128xf32, #tpu.memory_space<vmem>>, %arg3: memref<128x128xf32, #tpu.memory_space<vmem>>, %arg4: memref<1x128xf32, #tpu.memory_space<vmem>>, %arg5: memref<128x128xf32, #tpu.memory_space<vmem>>, %arg6: memref<128x128xf32, #tpu.memory_space<vmem>>) attributes {dimension_semantics = [#tpu.dimension_semantics<parallel>, #tpu.dimension_semantics<arbitrary>], iteration_bounds = array<i64: 1, 1>, scalar_prefetch = 0 : i64, scratch_operands = 1 : i64, tpu.core_type = #tpu.core_type<tc>, window_params = [{transform_indices = @transform_0, window_bounds = array<i64: 128, 128>}, {transform_indices = @transform_1, window_bounds = array<i64: 128, 128>}, {pipeline_mode = #tpu.pipeline_mode<synchronous>, transform_indices = @transform_2, window_bounds = array<i64: 1, 128>}, {transform_indices = @transform_3, window_bounds = array<i64: 128, 128>}]} {
    %c0_i32 = arith.constant 0 : i32
    %0 = arith.cmpi eq, %arg1, %c0_i32 : i32
    %1 = arith.extui %0 : i1 to i32
    %c0_i32_0 = arith.constant 0 : i32
    %2 = arith.cmpi ne, %1, %c0_i32_0 : i32
    scf.if %2 {
      %cst_10 = arith.constant 0.000000e+00 : f32
      %12 = vector.broadcast %cst_10 : f32 to vector<128x128xf32>
      %c0_11 = arith.constant 0 : index
      %c0_12 = arith.constant 0 : index
      %13 = vector.load %arg6[%c0_11, %c0_12] : memref<128x128xf32, #tpu.memory_space<vmem>>, vector<128x128xf32>
      tpu.vector_store %arg6[%c0_11, %c0_12], %12 {strides = array<i32>} : memref<128x128xf32, #tpu.memory_space<vmem>>, vector<128x128xf32>,
    } else {
    }
    %c0 = arith.constant 0 : index
    %c0_1 = arith.constant 0 : index
    %3 = vector.load %arg6[%c0, %c0_1] : memref<128x128xf32, #tpu.memory_space<vmem>>, vector<128x128xf32>
    %c0_2 = arith.constant 0 : index
    %c0_3 = arith.constant 0 : index
    %4 = vector.load %arg2[%c0_2, %c0_3] : memref<128x128xf32, #tpu.memory_space<vmem>>, vector<128x128xf32>
    %c0_4 = arith.constant 0 : index
    %c0_5 = arith.constant 0 : index
    %5 = vector.load %arg3[%c0_4, %c0_5] : memref<128x128xf32, #tpu.memory_space<vmem>>, vector<128x128xf32>
    %cst = arith.constant dense<0.000000e+00> : vector<128x128xf32>
    %6 = tpu.matmul %4, %5, %cst {dimension_numbers = #tpu.dot_dimension_numbers<[1], [0], [0], [1], [0, 0, 1, 1], [], []>} : vector<128x128xf32>, vector<128x128xf32>, vector<128x128xf32> -> vector<128x128xf32>
    %7 = arith.addf %3, %6 : vector<128x128xf32>
    %c0_6 = arith.constant 0 : index
    %c0_7 = arith.constant 0 : index
    %8 = vector.load %arg6[%c0_6, %c0_7] : memref<128x128xf32, #tpu.memory_space<vmem>>, vector<128x128xf32>
    tpu.vector_store %arg6[%c0_6, %c0_7], %7 {strides = array<i32>} : memref<128x128xf32, #tpu.memory_space<vmem>>, vector<128x128xf32>,
    %c0_i32_8 = arith.constant 0 : i32
    %9 = arith.cmpi eq, %arg1, %c0_i32_8 : i32
    %10 = arith.extui %9 : i1 to i32
    %c0_i32_9 = arith.constant 0 : i32
    %11 = arith.cmpi ne, %10, %c0_i32_9 : i32
    scf.if %11 {
      %c0_10 = arith.constant 0 : index
      %c0_11 = arith.constant 0 : index
      %12 = vector.load %arg6[%c0_10, %c0_11] : memref<128x128xf32, #tpu.memory_space<vmem>>, vector<128x128xf32>
      %c0_12 = arith.constant 0 : index
      %c0_13 = arith.constant 0 : index
      %13 = vector.load %arg4[%c0_12, %c0_13] : memref<1x128xf32, #tpu.memory_space<vmem>>, vector<1x128xf32>
      %14 = vector.broadcast %13 : vector<1x128xf32> to vector<128x128xf32>
      %15 = arith.addf %12, %14 : vector<128x128xf32>
      %cst_14 = arith.constant 0.000000e+00 : f32
      %16 = vector.broadcast %cst_14 : f32 to vector<128x128xf32>
      %17 = arith.maximumf %15, %16 : vector<128x128xf32>
      %c0_15 = arith.constant 0 : index
      %c0_16 = arith.constant 0 : index
      %18 = vector.load %arg5[%c0_15, %c0_16] : memref<128x128xf32, #tpu.memory_space<vmem>>, vector<128x128xf32>
      tpu.vector_store %arg5[%c0_15, %c0_16], %17 {strides = array<i32>} : memref<128x128xf32, #tpu.memory_space<vmem>>, vector<128x128xf32>,
    } else {
    }
    return
  }
  func.func @transform_0(%arg0: i32, %arg1: i32) -> (i32, i32) {
    %c0_i32 = arith.constant 0 : i32
    return %arg0, %arg1 : i32, i32
  }
  func.func @transform_1(%arg0: i32, %arg1: i32) -> (i32, i32) {
    %c0_i32 = arith.constant 0 : i32
    %c0_i32_0 = arith.constant 0 : i32
    return %arg1, %c0_i32 : i32, i32
  }
  func.func @transform_2(%arg0: i32, %arg1: i32) -> (i32, i32) {
    %c0_i32 = arith.constant 0 : i32
    %c0_i32_0 = arith.constant 0 : i32
    %c0_i32_1 = arith.constant 0 : i32
    return %c0_i32, %c0_i32_0 : i32, i32
  }
  func.func @transform_3(%arg0: i32, %arg1: i32) -> (i32, i32) {
    %c0_i32 = arith.constant 0 : i32
    %c0_i32_0 = arith.constant 0 : i32
    return %arg0, %c0_i32 : i32, i32
  }
}

module attributes {stable_mosaic.version = 11 : i64} {
  func.func @_xw_kernel(%arg0: i32, %arg1: memref<128x128xf32, #tpu.memory_space<vmem>>, %arg2: memref<128x128xf32, #tpu.memory_space<vmem>>, %arg3: memref<128x128xf32, #tpu.memory_space<vmem>>) attributes {dimension_semantics = [#tpu.dimension_semantics<parallel>], iteration_bounds = array<i64: 1>, scalar_prefetch = 0 : i64, scratch_operands = 0 : i64, tpu.core_type = #tpu.core_type<tc>, window_params = [{transform_indices = @transform_0, window_bounds = array<i64: 128, 128>}, {pipeline_mode = #tpu.pipeline_mode<synchronous>, transform_indices = @transform_1, window_bounds = array<i64: 128, 128>}, {transform_indices = @transform_2, window_bounds = array<i64: 128, 128>}]} {
    %c0 = arith.constant 0 : index
    %c0_0 = arith.constant 0 : index
    %0 = vector.load %arg1[%c0, %c0_0] : memref<128x128xf32, #tpu.memory_space<vmem>>, vector<128x128xf32>
    %c0_1 = arith.constant 0 : index
    %c0_2 = arith.constant 0 : index
    %1 = vector.load %arg2[%c0_1, %c0_2] : memref<128x128xf32, #tpu.memory_space<vmem>>, vector<128x128xf32>
    %cst = arith.constant dense<0.000000e+00> : vector<128x128xf32>
    %2 = tpu.matmul %0, %1, %cst {dimension_numbers = #tpu.dot_dimension_numbers<[1], [0], [0], [1], [0, 0, 1, 1], [], []>} : vector<128x128xf32>, vector<128x128xf32>, vector<128x128xf32> -> vector<128x128xf32>
    %c0_3 = arith.constant 0 : index
    %c0_4 = arith.constant 0 : index
    %3 = vector.load %arg3[%c0_3, %c0_4] : memref<128x128xf32, #tpu.memory_space<vmem>>, vector<128x128xf32>
    tpu.vector_store %arg3[%c0_3, %c0_4], %2 {strides = array<i32>} : memref<128x128xf32, #tpu.memory_space<vmem>>, vector<128x128xf32>,
    return
  }
  func.func @transform_0(%arg0: i32) -> (i32, i32) {
    %c0_i32 = arith.constant 0 : i32
    %c0_i32_0 = arith.constant 0 : i32
    return %arg0, %c0_i32 : i32, i32
  }
  func.func @transform_1(%arg0: i32) -> (i32, i32) {
    %c0_i32 = arith.constant 0 : i32
    %c0_i32_0 = arith.constant 0 : i32
    %c0_i32_1 = arith.constant 0 : i32
    return %c0_i32, %c0_i32_0 : i32, i32
  }
  func.func @transform_2(%arg0: i32) -> (i32, i32) {
    %c0_i32 = arith.constant 0 : i32
    %c0_i32_0 = arith.constant 0 : i32
    return %arg0, %c0_i32 : i32, i32
  }
}

module attributes {stable_mosaic.version = 11 : i64} {
  func.func @_agg_kernel(%arg0: i32, %arg1: i32, %arg2: memref<128x128xf32, #tpu.memory_space<vmem>>, %arg3: memref<128x128xf32, #tpu.memory_space<vmem>>, %arg4: memref<1x128xf32, #tpu.memory_space<vmem>>, %arg5: memref<128x128xf32, #tpu.memory_space<vmem>>, %arg6: memref<128x128xf32, #tpu.memory_space<vmem>>) attributes {dimension_semantics = [#tpu.dimension_semantics<parallel>, #tpu.dimension_semantics<arbitrary>], iteration_bounds = array<i64: 1, 1>, scalar_prefetch = 0 : i64, scratch_operands = 1 : i64, tpu.core_type = #tpu.core_type<tc>, window_params = [{transform_indices = @transform_0, window_bounds = array<i64: 128, 128>}, {transform_indices = @transform_1, window_bounds = array<i64: 128, 128>}, {pipeline_mode = #tpu.pipeline_mode<synchronous>, transform_indices = @transform_2, window_bounds = array<i64: 1, 128>}, {transform_indices = @transform_3, window_bounds = array<i64: 128, 128>}]} {
    %c0_i32 = arith.constant 0 : i32
    %0 = arith.cmpi eq, %arg1, %c0_i32 : i32
    %1 = arith.extui %0 : i1 to i32
    %c0_i32_0 = arith.constant 0 : i32
    %2 = arith.cmpi ne, %1, %c0_i32_0 : i32
    scf.if %2 {
      %cst_10 = arith.constant 0.000000e+00 : f32
      %12 = vector.broadcast %cst_10 : f32 to vector<128x128xf32>
      %c0_11 = arith.constant 0 : index
      %c0_12 = arith.constant 0 : index
      %13 = vector.load %arg6[%c0_11, %c0_12] : memref<128x128xf32, #tpu.memory_space<vmem>>, vector<128x128xf32>
      tpu.vector_store %arg6[%c0_11, %c0_12], %12 {strides = array<i32>} : memref<128x128xf32, #tpu.memory_space<vmem>>, vector<128x128xf32>,
    } else {
    }
    %c0 = arith.constant 0 : index
    %c0_1 = arith.constant 0 : index
    %3 = vector.load %arg6[%c0, %c0_1] : memref<128x128xf32, #tpu.memory_space<vmem>>, vector<128x128xf32>
    %c0_2 = arith.constant 0 : index
    %c0_3 = arith.constant 0 : index
    %4 = vector.load %arg2[%c0_2, %c0_3] : memref<128x128xf32, #tpu.memory_space<vmem>>, vector<128x128xf32>
    %c0_4 = arith.constant 0 : index
    %c0_5 = arith.constant 0 : index
    %5 = vector.load %arg3[%c0_4, %c0_5] : memref<128x128xf32, #tpu.memory_space<vmem>>, vector<128x128xf32>
    %cst = arith.constant dense<0.000000e+00> : vector<128x128xf32>
    %6 = tpu.matmul %4, %5, %cst {dimension_numbers = #tpu.dot_dimension_numbers<[1], [0], [0], [1], [0, 0, 1, 1], [], []>} : vector<128x128xf32>, vector<128x128xf32>, vector<128x128xf32> -> vector<128x128xf32>
    %7 = arith.addf %3, %6 : vector<128x128xf32>
    %c0_6 = arith.constant 0 : index
    %c0_7 = arith.constant 0 : index
    %8 = vector.load %arg6[%c0_6, %c0_7] : memref<128x128xf32, #tpu.memory_space<vmem>>, vector<128x128xf32>
    tpu.vector_store %arg6[%c0_6, %c0_7], %7 {strides = array<i32>} : memref<128x128xf32, #tpu.memory_space<vmem>>, vector<128x128xf32>,
    %c0_i32_8 = arith.constant 0 : i32
    %9 = arith.cmpi eq, %arg1, %c0_i32_8 : i32
    %10 = arith.extui %9 : i1 to i32
    %c0_i32_9 = arith.constant 0 : i32
    %11 = arith.cmpi ne, %10, %c0_i32_9 : i32
    scf.if %11 {
      %c0_10 = arith.constant 0 : index
      %c0_11 = arith.constant 0 : index
      %12 = vector.load %arg6[%c0_10, %c0_11] : memref<128x128xf32, #tpu.memory_space<vmem>>, vector<128x128xf32>
      %c0_12 = arith.constant 0 : index
      %c0_13 = arith.constant 0 : index
      %13 = vector.load %arg4[%c0_12, %c0_13] : memref<1x128xf32, #tpu.memory_space<vmem>>, vector<1x128xf32>
      %14 = vector.broadcast %13 : vector<1x128xf32> to vector<128x128xf32>
      %15 = arith.addf %12, %14 : vector<128x128xf32>
      %c0_14 = arith.constant 0 : index
      %c0_15 = arith.constant 0 : index
      %16 = vector.load %arg5[%c0_14, %c0_15] : memref<128x128xf32, #tpu.memory_space<vmem>>, vector<128x128xf32>
      tpu.vector_store %arg5[%c0_14, %c0_15], %15 {strides = array<i32>} : memref<128x128xf32, #tpu.memory_space<vmem>>, vector<128x128xf32>,
    } else {
    }
    return
  }
  func.func @transform_0(%arg0: i32, %arg1: i32) -> (i32, i32) {
    %c0_i32 = arith.constant 0 : i32
    return %arg0, %arg1 : i32, i32
  }
  func.func @transform_1(%arg0: i32, %arg1: i32) -> (i32, i32) {
    %c0_i32 = arith.constant 0 : i32
    %c0_i32_0 = arith.constant 0 : i32
    return %arg1, %c0_i32 : i32, i32
  }
  func.func @transform_2(%arg0: i32, %arg1: i32) -> (i32, i32) {
    %c0_i32 = arith.constant 0 : i32
    %c0_i32_0 = arith.constant 0 : i32
    %c0_i32_1 = arith.constant 0 : i32
    return %c0_i32, %c0_i32_0 : i32, i32
  }
  func.func @transform_3(%arg0: i32, %arg1: i32) -> (i32, i32) {
    %c0_i32 = arith.constant 0 : i32
    %c0_i32_0 = arith.constant 0 : i32
    return %arg0, %c0_i32 : i32, i32
  }
}

</mosaic_0001>

<llo_original>
// kernel: gcn_forward.4
$region0: #{gcn_forward.4}
  #allocation0 [shape = 'u32[]', space=smem, size = 0x4, offset = 0x4, fixed_abs, tag = 'smem constant byte address 0x4 - core index']
  #allocation1 [shape = 'u32[72,128]{1,0:T(1,128)}', space=vmem, size = 0x9000, scoped, tag = 'internal scratch']
  %s0 = inlined_call_operand.vmem [shape: f32[128,64], index: 0, kind: input, shape index: {}]
  %s1 = inlined_call_operand.vmem [shape: f32[64,128], index: 1, kind: input, shape index: {}]
  %s2 = inlined_call_operand.vmem [shape: f32[128,128], index: 2, kind: output, shape index: {}]
  %s3 = sld [smem:[#allocation0]]
  $region18: #{gcn_forward.4} parent=0
    _
  %s5 = ssub.s32 1, %s3
  %s6 = scalar_select 0, %s5, %s3
  // Predicated region
  $region2: #{gcn_forward.4} parent=0 // pred_check
    _
  $region3: #{gcn_forward.4} parent=0 // pred_check_branch
    %8 = sbr.rel (0) target = $region5
  $region4: #{gcn_forward.4} parent=0 // pred_region
    _
  $region5: #{gcn_forward.4} parent=0 // pred_fallthru
    _
  // Predicated region
  $region6: #{gcn_forward.4} parent=0 // pred_check
    _
  $region7: #{gcn_forward.4} parent=0 // pred_check_branch
    %10 = sbr.rel (0) target = $region9
  $region8: #{gcn_forward.4} parent=0 // pred_region
    _
  $region9: #{gcn_forward.4} parent=0 // pred_fallthru
    _
  %v11 = vld [vmem:[%s0] sm:$0xff]
  %v12 = vld [vmem:[%s0 + $0x8] sm:$0xff]
  %v13 = vld [vmem:[%s0 + $0x10] sm:$0xff]
  %v14 = vld [vmem:[%s0 + $0x18] sm:$0xff]
  %v15 = vld [vmem:[%s0 + $0x20] sm:$0xff]
  %v16 = vld [vmem:[%s0 + $0x28] sm:$0xff]
  %v17 = vld [vmem:[%s0 + $0x30] sm:$0xff]
  %v18 = vld [vmem:[%s0 + $0x38] sm:$0xff]
  %v19 = vld [vmem:[%s0 + $0x40] sm:$0xff]
  %v20 = vld [vmem:[%s0 + $0x48] sm:$0xff]
  %v21 = vld [vmem:[%s0 + $0x50] sm:$0xff]
  %v22 = vld [vmem:[%s0 + $0x58] sm:$0xff]
  %v23 = vld [vmem:[%s0 + $0x60] sm:$0xff]
  %v24 = vld [vmem:[%s0 + $0x68] sm:$0xff]
  %v25 = vld [vmem:[%s0 + $0x70] sm:$0xff]
  %v26 = vld [vmem:[%s0 + $0x78] sm:$0xff]
  %v27 = vld [vmem:[%s1] sm:$0xff]
  %v28 = vld [vmem:[%s1 + $0x8] sm:$0xff]
  %v29 = vld [vmem:[%s1 + $0x10] sm:$0xff]
  %v30 = vld [vmem:[%s1 + $0x18] sm:$0xff]
  %v31 = vld [vmem:[%s1 + $0x20] sm:$0xff]
  %v32 = vld [vmem:[%s1 + $0x28] sm:$0xff]
  %v33 = vld [vmem:[%s1 + $0x30] sm:$0xff]
  %v34 = vld [vmem:[%s1 + $0x38] sm:$0xff]
  %vm35 = vcmask 523264
  %v37 = vsel %vm35, %v11, 0
  %v40 = vsel %vm35, %v12, 0
  %v43 = vsel %vm35, %v13, 0
  %v46 = vsel %vm35, %v14, 0
  %v49 = vsel %vm35, %v15, 0
  %v52 = vsel %vm35, %v16, 0
  %v55 = vsel %vm35, %v17, 0
  %v58 = vsel %vm35, %v18, 0
  %v61 = vsel %vm35, %v19, 0
  %v64 = vsel %vm35, %v20, 0
  %v67 = vsel %vm35, %v21, 0
  %v70 = vsel %vm35, %v22, 0
  %v73 = vsel %vm35, %v23, 0
  %v76 = vsel %vm35, %v24, 0
  %v79 = vsel %vm35, %v25, 0
  %v82 = vsel %vm35, %v26, 0
  %84 = vmatpush.msra.mxu0 0.0
  %85 = vmatpush.msra.mxu0 0.0
  %86 = vmatpush.msra.mxu0 0.0
  %87 = vmatpush.msra.mxu0 0.0
  %88 = vmatpush.msra.mxu0 0.0
  %89 = vmatpush.msra.mxu0 0.0
  %90 = vmatpush.msra.mxu0 0.0
  %91 = vmatpush.msra.mxu0 0.0
  %92 = vmatpush.msra.mxu0 %v34
  %93 = vmatpush.msra.mxu0 %v33
  %94 = vmatpush.msra.mxu0 %v32
  %95 = vmatpush.msra.mxu0 %v31
  %96 = vmatpush.msra.mxu0 %v30
  %97 = vmatpush.msra.mxu0 %v29
  %98 = vmatpush.msra.mxu0 %v28
  %99 = vmatpush.msra.mxu0 %v27
  %100 = vmatmul.f32.gmra.mxu0 %v37
  %v101 = vpop.f32.mrf.mxu0
  %v102 = vadd.f32 0.0, %v101
  %103 = vmatmul.f32.gmra.mxu0 %v40
  %v104 = vpop.f32.mrf.mxu0
  %v105 = vadd.f32 0.0, %v104
  %106 = vmatmul.f32.gmra.mxu0 %v43
  %v107 = vpop.f32.mrf.mxu0
  %v108 = vadd.f32 0.0, %v107
  %109 = vmatmul.f32.gmra.mxu0 %v46
  %v110 = vpop.f32.mrf.mxu0
  %v111 = vadd.f32 0.0, %v110
  %112 = vmatmul.f32.gmra.mxu0 %v49
  %v113 = vpop.f32.mrf.mxu0
  %v114 = vadd.f32 0.0, %v113
  %115 = vmatmul.f32.gmra.mxu0 %v52
  %v116 = vpop.f32.mrf.mxu0
  %v117 = vadd.f32 0.0, %v116
  %118 = vmatmul.f32.gmra.mxu0 %v55
  %v119 = vpop.f32.mrf.mxu0
  %v120 = vadd.f32 0.0, %v119
  %121 = vmatmul.f32.gmra.mxu0 %v58
  %v122 = vpop.f32.mrf.mxu0
  %v123 = vadd.f32 0.0, %v122
  %124 = vmatmul.f32.gmra.mxu0 %v61
  %v125 = vpop.f32.mrf.mxu0
  %v126 = vadd.f32 0.0, %v125
  %127 = vmatmul.f32.gmra.mxu0 %v64
  %v128 = vpop.f32.mrf.mxu0
  %v129 = vadd.f32 0.0, %v128
  %130 = vmatmul.f32.gmra.mxu0 %v67
  %v131 = vpop.f32.mrf.mxu0
  %v132 = vadd.f32 0.0, %v131
  %133 = vmatmul.f32.gmra.mxu0 %v70
  %v134 = vpop.f32.mrf.mxu0
  %v135 = vadd.f32 0.0, %v134
  %136 = vmatmul.f32.gmra.mxu0 %v73
  %v137 = vpop.f32.mrf.mxu0
  %v138 = vadd.f32 0.0, %v137
  %139 = vmatmul.f32.gmra.mxu0 %v76
  %v140 = vpop.f32.mrf.mxu0
  %v141 = vadd.f32 0.0, %v140
  %142 = vmatmul.f32.gmra.mxu0 %v79
  %v143 = vpop.f32.mrf.mxu0
  %v144 = vadd.f32 0.0, %v143
  %145 = vmatmul.f32.gmra.mxu0 %v82
  %v146 = vpop.f32.mrf.mxu0
  %v147 = vadd.f32 0.0, %v146
  %148 = vdwg.mxu0
  %149 = vst [vmem:[%s2] sm:$0xff] %v102
  %150 = vst [vmem:[%s2 + $0x8] sm:$0xff] %v105
  %151 = vst [vmem:[%s2 + $0x10] sm:$0xff] %v108
  %152 = vst [vmem:[%s2 + $0x18] sm:$0xff] %v111
  %153 = vst [vmem:[%s2 + $0x20] sm:$0xff] %v114
  %154 = vst [vmem:[%s2 + $0x28] sm:$0xff] %v117
  %155 = vst [vmem:[%s2 + $0x30] sm:$0xff] %v120
  %156 = vst [vmem:[%s2 + $0x38] sm:$0xff] %v123
  %157 = vst [vmem:[%s2 + $0x40] sm:$0xff] %v126
  %158 = vst [vmem:[%s2 + $0x48] sm:$0xff] %v129
  %159 = vst [vmem:[%s2 + $0x50] sm:$0xff] %v132
  %160 = vst [vmem:[%s2 + $0x58] sm:$0xff] %v135
  %161 = vst [vmem:[%s2 + $0x60] sm:$0xff] %v138
  %162 = vst [vmem:[%s2 + $0x68] sm:$0xff] %v141
  %163 = vst [vmem:[%s2 + $0x70] sm:$0xff] %v144
  %164 = vst [vmem:[%s2 + $0x78] sm:$0xff] %v147
  // Predicated region
  $region10: #{gcn_forward.4} parent=0 // pred_check
    _
  $region11: #{gcn_forward.4} parent=0 // pred_check_branch
    %166 = sbr.rel (0) target = $region13
  $region12: #{gcn_forward.4} parent=0 // pred_region
    _
  $region13: #{gcn_forward.4} parent=0 // pred_fallthru
    _
  // Predicated region
  $region14: #{gcn_forward.4} parent=0 // pred_check
    _
  $region15: #{gcn_forward.4} parent=0 // pred_check_branch
    %168 = sbr.rel (0) target = $region17
  $region16: #{gcn_forward.4} parent=0 // pred_region
    _
  $region17: #{gcn_forward.4} parent=0 // pred_fallthru
    _

// kernel: gcn_forward.6
$region0: #{gcn_forward.6}
  #allocation0 [shape = 'u32[]', space=smem, size = 0x4, offset = 0x4, fixed_abs, tag = 'smem constant byte address 0x4 - core index']
  #allocation1 [shape = 'u32[72,128]{1,0:T(1,128)}', space=vmem, size = 0x9000, scoped, tag = 'internal scratch']
  %s0 = inlined_call_operand.vmem [shape: f32[128,128], index: 0, kind: input, shape index: {}]
  %s1 = inlined_call_operand.vmem [shape: f32[128,128], index: 1, kind: input, shape index: {}]
  %s2 = inlined_call_operand.vmem [shape: f32[128,128], index: 2, kind: output, shape index: {}]
  %s3 = sld [smem:[#allocation0]]
  $region18: #{gcn_forward.6} parent=0
    _
  %s5 = ssub.s32 1, %s3
  %s6 = scalar_select 0, %s5, %s3
  // Predicated region
  $region2: #{gcn_forward.6} parent=0 // pred_check
    _
  $region3: #{gcn_forward.6} parent=0 // pred_check_branch
    %8 = sbr.rel (0) target = $region5
  $region4: #{gcn_forward.6} parent=0 // pred_region
    _
  $region5: #{gcn_forward.6} parent=0 // pred_fallthru
    _
  // Predicated region
  $region6: #{gcn_forward.6} parent=0 // pred_check
    _
  $region7: #{gcn_forward.6} parent=0 // pred_check_branch
    %10 = sbr.rel (0) target = $region9
  $region8: #{gcn_forward.6} parent=0 // pred_region
    _
  $region9: #{gcn_forward.6} parent=0 // pred_fallthru
    _
  %v11 = vld [vmem:[%s0] sm:$0xff]
  %v12 = vld [vmem:[%s0 + $0x8] sm:$0xff]
  %v13 = vld [vmem:[%s0 + $0x10] sm:$0xff]
  %v14 = vld [vmem:[%s0 + $0x18] sm:$0xff]
  %v15 = vld [vmem:[%s0 + $0x20] sm:$0xff]
  %v16 = vld [vmem:[%s0 + $0x28] sm:$0xff]
  %v17 = vld [vmem:[%s0 + $0x30] sm:$0xff]
  %v18 = vld [vmem:[%s0 + $0x38] sm:$0xff]
  %v19 = vld [vmem:[%s0 + $0x40] sm:$0xff]
  %v20 = vld [vmem:[%s0 + $0x48] sm:$0xff]
  %v21 = vld [vmem:[%s0 + $0x50] sm:$0xff]
  %v22 = vld [vmem:[%s0 + $0x58] sm:$0xff]
  %v23 = vld [vmem:[%s0 + $0x60] sm:$0xff]
  %v24 = vld [vmem:[%s0 + $0x68] sm:$0xff]
  %v25 = vld [vmem:[%s0 + $0x70] sm:$0xff]
  %v26 = vld [vmem:[%s0 + $0x78] sm:$0xff]
  %v27 = vld [vmem:[%s1] sm:$0xff]
  %v28 = vld [vmem:[%s1 + $0x8] sm:$0xff]
  %v29 = vld [vmem:[%s1 + $0x10] sm:$0xff]
  %v30 = vld [vmem:[%s1 + $0x18] sm:$0xff]
  %v31 = vld [vmem:[%s1 + $0x20] sm:$0xff]
  %v32 = vld [vmem:[%s1 + $0x28] sm:$0xff]
  %v33 = vld [vmem:[%s1 + $0x30] sm:$0xff]
  %v34 = vld [vmem:[%s1 + $0x38] sm:$0xff]
  %v35 = vld [vmem:[%s1 + $0x40] sm:$0xff]
  %v36 = vld [vmem:[%s1 + $0x48] sm:$0xff]
  %v37 = vld [vmem:[%s1 + $0x50] sm:$0xff]
  %v38 = vld [vmem:[%s1 + $0x58] sm:$0xff]
  %v39 = vld [vmem:[%s1 + $0x60] sm:$0xff]
  %v40 = vld [vmem:[%s1 + $0x68] sm:$0xff]
  %v41 = vld [vmem:[%s1 + $0x70] sm:$0xff]
  %v42 = vld [vmem:[%s1 + $0x78] sm:$0xff]
  %43 = vmatpush.msra.mxu0 %v42
  %44 = vmatpush.msra.mxu0 %v41
  %45 = vmatpush.msra.mxu0 %v40
  %46 = vmatpush.msra.mxu0 %v39
  %47 = vmatpush.msra.mxu0 %v38
  %48 = vmatpush.msra.mxu0 %v37
  %49 = vmatpush.msra.mxu0 %v36
  %50 = vmatpush.msra.mxu0 %v35
  %51 = vmatpush.msra.mxu0 %v34
  %52 = vmatpush.msra.mxu0 %v33
  %53 = vmatpush.msra.mxu0 %v32
  %54 = vmatpush.msra.mxu0 %v31
  %55 = vmatpush.msra.mxu0 %v30
  %56 = vmatpush.msra.mxu0 %v29
  %57 = vmatpush.msra.mxu0 %v28
  %58 = vmatpush.msra.mxu0 %v27
  %59 = vmatmul.f32.gmra.mxu0 %v11
  %v60 = vpop.f32.mrf.mxu0
  %v61 = vadd.f32 0.0, %v60
  %62 = vmatmul.f32.gmra.mxu0 %v12
  %v63 = vpop.f32.mrf.mxu0
  %v64 = vadd.f32 0.0, %v63
  %65 = vmatmul.f32.gmra.mxu0 %v13
  %v66 = vpop.f32.mrf.mxu0
  %v67 = vadd.f32 0.0, %v66
  %68 = vmatmul.f32.gmra.mxu0 %v14
  %v69 = vpop.f32.mrf.mxu0
  %v70 = vadd.f32 0.0, %v69
  %71 = vmatmul.f32.gmra.mxu0 %v15
  %v72 = vpop.f32.mrf.mxu0
  %v73 = vadd.f32 0.0, %v72
  %74 = vmatmul.f32.gmra.mxu0 %v16
  %v75 = vpop.f32.mrf.mxu0
  %v76 = vadd.f32 0.0, %v75
  %77 = vmatmul.f32.gmra.mxu0 %v17
  %v78 = vpop.f32.mrf.mxu0
  %v79 = vadd.f32 0.0, %v78
  %80 = vmatmul.f32.gmra.mxu0 %v18
  %v81 = vpop.f32.mrf.mxu0
  %v82 = vadd.f32 0.0, %v81
  %83 = vmatmul.f32.gmra.mxu0 %v19
  %v84 = vpop.f32.mrf.mxu0
  %v85 = vadd.f32 0.0, %v84
  %86 = vmatmul.f32.gmra.mxu0 %v20
  %v87 = vpop.f32.mrf.mxu0
  %v88 = vadd.f32 0.0, %v87
  %89 = vmatmul.f32.gmra.mxu0 %v21
  %v90 = vpop.f32.mrf.mxu0
  %v91 = vadd.f32 0.0, %v90
  %92 = vmatmul.f32.gmra.mxu0 %v22
  %v93 = vpop.f32.mrf.mxu0
  %v94 = vadd.f32 0.0, %v93
  %95 = vmatmul.f32.gmra.mxu0 %v23
  %v96 = vpop.f32.mrf.mxu0
  %v97 = vadd.f32 0.0, %v96
  %98 = vmatmul.f32.gmra.mxu0 %v24
  %v99 = vpop.f32.mrf.mxu0
  %v100 = vadd.f32 0.0, %v99
  %101 = vmatmul.f32.gmra.mxu0 %v25
  %v102 = vpop.f32.mrf.mxu0
  %v103 = vadd.f32 0.0, %v102
  %104 = vmatmul.f32.gmra.mxu0 %v26
  %v105 = vpop.f32.mrf.mxu0
  %v106 = vadd.f32 0.0, %v105
  %107 = vdwg.mxu0
  %108 = vst [vmem:[%s2] sm:$0xff] %v61
  %109 = vst [vmem:[%s2 + $0x8] sm:$0xff] %v64
  %110 = vst [vmem:[%s2 + $0x10] sm:$0xff] %v67
  %111 = vst [vmem:[%s2 + $0x18] sm:$0xff] %v70
  %112 = vst [vmem:[%s2 + $0x20] sm:$0xff] %v73
  %113 = vst [vmem:[%s2 + $0x28] sm:$0xff] %v76
  %114 = vst [vmem:[%s2 + $0x30] sm:$0xff] %v79
  %115 = vst [vmem:[%s2 + $0x38] sm:$0xff] %v82
  %116 = vst [vmem:[%s2 + $0x40] sm:$0xff] %v85
  %117 = vst [vmem:[%s2 + $0x48] sm:$0xff] %v88
  %118 = vst [vmem:[%s2 + $0x50] sm:$0xff] %v91
  %119 = vst [vmem:[%s2 + $0x58] sm:$0xff] %v94
  %120 = vst [vmem:[%s2 + $0x60] sm:$0xff] %v97
  %121 = vst [vmem:[%s2 + $0x68] sm:$0xff] %v100
  %122 = vst [vmem:[%s2 + $0x70] sm:$0xff] %v103
  %123 = vst [vmem:[%s2 + $0x78] sm:$0xff] %v106
  // Predicated region
  $region10: #{gcn_forward.6} parent=0 // pred_check
    _
  $region11: #{gcn_forward.6} parent=0 // pred_check_branch
    %125 = sbr.rel (0) target = $region13
  $region12: #{gcn_forward.6} parent=0 // pred_region
    _
  $region13: #{gcn_forward.6} parent=0 // pred_fallthru
    _
  // Predicated region
  $region14: #{gcn_forward.6} parent=0 // pred_check
    _
  $region15: #{gcn_forward.6} parent=0 // pred_check_branch
    %127 = sbr.rel (0) target = $region17
  $region16: #{gcn_forward.6} parent=0 // pred_region
    _
  $region17: #{gcn_forward.6} parent=0 // pred_fallthru
    _

// kernel: gcn_forward.7
$region0: #{gcn_forward.7}
  #allocation0 [shape = 'u32[]', space=smem, size = 0x4, offset = 0x4, fixed_abs, tag = 'smem constant byte address 0x4 - core index']
  #allocation1 [shape = 'u32[72,128]{1,0:T(1,128)}', space=vmem, size = 0x9000, scoped, tag = 'internal scratch']
  #allocation2 [shape = 'f32[128,128]{1,0:T(8,128)}', space=vmem, size = 0x10000, scoped, tag = 'scratch operand']
  %s0 = inlined_call_operand.vmem [shape: f32[128,128], index: 0, kind: input, shape index: {}]
  %s1 = inlined_call_operand.vmem [shape: f32[128,128], index: 1, kind: input, shape index: {}]
  %s2 = inlined_call_operand.vmem [shape: f32[1,128], index: 2, kind: input, shape index: {}]
  %s3 = inlined_call_operand.vmem [shape: f32[128,128], index: 3, kind: output, shape index: {}]
  %s4 = sld [smem:[#allocation0]]
  $region30: #{gcn_forward.7} parent=0
    _
  %s6 = ssub.s32 1, %s4
  %s7 = scalar_select 0, %s6, %s4
  // Predicated region
  $region2: #{gcn_forward.7} parent=0 // pred_check
    _
  $region3: #{gcn_forward.7} parent=0 // pred_check_branch
    %9 = sbr.rel (0) target = $region5
  $region4: #{gcn_forward.7} parent=0 // pred_region
    _
  $region5: #{gcn_forward.7} parent=0 // pred_fallthru
    _
  // Predicated region
  $region6: #{gcn_forward.7} parent=0 // pred_check
    _
  $region7: #{gcn_forward.7} parent=0 // pred_check_branch
    %11 = sbr.rel (0) target = $region9
  $region8: #{gcn_forward.7} parent=0 // pred_region
    _
  $region9: #{gcn_forward.7} parent=0 // pred_fallthru
    _
  // Predicated region
  $region10: #{gcn_forward.7} parent=0 // pred_check
    _
  $region11: #{gcn_forward.7} parent=0 // pred_check_branch
    %13 = sbr.rel (0) target = $region13
  $region12: #{gcn_forward.7} parent=0 // pred_region
    _
  $region13: #{gcn_forward.7} parent=0 // pred_fallthru
    _
  %p14 = scmp.eq.s32.totalorder 0, 0
  // Predicated region
  $region14: #{gcn_forward.7} parent=0 // pred_check
    %p15 = pneg %p14
  $region15: #{gcn_forward.7} parent=0 // pred_check_branch
    %17 = sbr.rel (%p15) target = $region17
  $region16: #{gcn_forward.7} parent=0 // pred_region
    %18 = vst [vmem:[#allocation2] sm:$0xff] 0.0
    %19 = vst [vmem:[#allocation2 + $0x8] sm:$0xff] 0.0
    %20 = vst [vmem:[#allocation2 + $0x10] sm:$0xff] 0.0
    %21 = vst [vmem:[#allocation2 + $0x18] sm:$0xff] 0.0
    %22 = vst [vmem:[#allocation2 + $0x20] sm:$0xff] 0.0
    %23 = vst [vmem:[#allocation2 + $0x28] sm:$0xff] 0.0
    %24 = vst [vmem:[#allocation2 + $0x30] sm:$0xff] 0.0
    %25 = vst [vmem:[#allocation2 + $0x38] sm:$0xff] 0.0
    %26 = vst [vmem:[#allocation2 + $0x40] sm:$0xff] 0.0
    %27 = vst [vmem:[#allocation2 + $0x48] sm:$0xff] 0.0
    %28 = vst [vmem:[#allocation2 + $0x50] sm:$0xff] 0.0
    %29 = vst [vmem:[#allocation2 + $0x58] sm:$0xff] 0.0
    %30 = vst [vmem:[#allocation2 + $0x60] sm:$0xff] 0.0
    %31 = vst [vmem:[#allocation2 + $0x68] sm:$0xff] 0.0
    %32 = vst [vmem:[#allocation2 + $0x70] sm:$0xff] 0.0
    %33 = vst [vmem:[#allocation2 + $0x78] sm:$0xff] 0.0
  $region17: #{gcn_forward.7} parent=0 // pred_fallthru
    _
  %v34 = vld [vmem:[#allocation2] sm:$0xff]
  %v35 = vld [vmem:[#allocation2 + $0x8] sm:$0xff]
  %v36 = vld [vmem:[#allocation2 + $0x10] sm:$0xff]
  %v37 = vld [vmem:[#allocation2 + $0x18] sm:$0xff]
  %v38 = vld [vmem:[#allocation2 + $0x20] sm:$0xff]
  %v39 = vld [vmem:[#allocation2 + $0x28] sm:$0xff]
  %v40 = vld [vmem:[#allocation2 + $0x30] sm:$0xff]
  %v41 = vld [vmem:[#allocation2 + $0x38] sm:$0xff]
  %v42 = vld [vmem:[#allocation2 + $0x40] sm:$0xff]
  %v43 = vld [vmem:[#allocation2 + $0x48] sm:$0xff]
  %v44 = vld [vmem:[#allocation2 + $0x50] sm:$0xff]
  %v45 = vld [vmem:[#allocation2 + $0x58] sm:$0xff]
  %v46 = vld [vmem:[#allocation2 + $0x60] sm:$0xff]
  %v47 = vld [vmem:[#allocation2 + $0x68] sm:$0xff]
  %v48 = vld [vmem:[#allocation2 + $0x70] sm:$0xff]
  %v49 = vld [vmem:[#allocation2 + $0x78] sm:$0xff]
  %v50 = vld [vmem:[%s0] sm:$0xff]
  %v51 = vld [vmem:[%s0 + $0x8] sm:$0xff]
  %v52 = vld [vmem:[%s0 + $0x10] sm:$0xff]
  %v53 = vld [vmem:[%s0 + $0x18] sm:$0xff]
  %v54 = vld [vmem:[%s0 + $0x20] sm:$0xff]
  %v55 = vld [vmem:[%s0 + $0x28] sm:$0xff]
  %v56 = vld [vmem:[%s0 + $0x30] sm:$0xff]
  %v57 = vld [vmem:[%s0 + $0x38] sm:$0xff]
  %v58 = vld [vmem:[%s0 + $0x40] sm:$0xff]
  %v59 = vld [vmem:[%s0 + $0x48] sm:$0xff]
  %v60 = vld [vmem:[%s0 + $0x50] sm:$0xff]
  %v61 = vld [vmem:[%s0 + $0x58] sm:$0xff]
  %v62 = vld [vmem:[%s0 + $0x60] sm:$0xff]
  %v63 = vld [vmem:[%s0 + $0x68] sm:$0xff]
  %v64 = vld [vmem:[%s0 + $0x70] sm:$0xff]
  %v65 = vld [vmem:[%s0 + $0x78] sm:$0xff]
  %v66 = vld [vmem:[%s1] sm:$0xff]
  %v67 = vld [vmem:[%s1 + $0x8] sm:$0xff]
  %v68 = vld [vmem:[%s1 + $0x10] sm:$0xff]
  %v69 = vld [vmem:[%s1 + $0x18] sm:$0xff]
  %v70 = vld [vmem:[%s1 + $0x20] sm:$0xff]
  %v71 = vld [vmem:[%s1 + $0x28] sm:$0xff]
  %v72 = vld [vmem:[%s1 + $0x30] sm:$0xff]
  %v73 = vld [vmem:[%s1 + $0x38] sm:$0xff]
  %v74 = vld [vmem:[%s1 + $0x40] sm:$0xff]
  %v75 = vld [vmem:[%s1 + $0x48] sm:$0xff]
  %v76 = vld [vmem:[%s1 + $0x50] sm:$0xff]
  %v77 = vld [vmem:[%s1 + $0x58] sm:$0xff]
  %v78 = vld [vmem:[%s1 + $0x60] sm:$0xff]
  %v79 = vld [vmem:[%s1 + $0x68] sm:$0xff]
  %v80 = vld [vmem:[%s1 + $0x70] sm:$0xff]
  %v81 = vld [vmem:[%s1 + $0x78] sm:$0xff]
  %82 = vmatpush.msra.mxu0 %v81
  %83 = vmatpush.msra.mxu0 %v80
  %84 = vmatpush.msra.mxu0 %v79
  %85 = vmatpush.msra.mxu0 %v78
  %86 = vmatpush.msra.mxu0 %v77
  %87 = vmatpush.msra.mxu0 %v76
  %88 = vmatpush.msra.mxu0 %v75
  %89 = vmatpush.msra.mxu0 %v74
  %90 = vmatpush.msra.mxu0 %v73
  %91 = vmatpush.msra.mxu0 %v72
  %92 = vmatpush.msra.mxu0 %v71
  %93 = vmatpush.msra.mxu0 %v70
  %94 = vmatpush.msra.mxu0 %v69
  %95 = vmatpush.msra.mxu0 %v68
  %96 = vmatpush.msra.mxu0 %v67
  %97 = vmatpush.msra.mxu0 %v66
  %98 = vmatmul.f32.gmra.mxu0 %v50
  %v99 = vpop.f32.mrf.mxu0
  %v100 = vadd.f32 0.0, %v99
  %101 = vmatmul.f32.gmra.mxu0 %v51
  %v102 = vpop.f32.mrf.mxu0
  %v103 = vadd.f32 0.0, %v102
  %104 = vmatmul.f32.gmra.mxu0 %v52
  %v105 = vpop.f32.mrf.mxu0
  %v106 = vadd.f32 0.0, %v105
  %107 = vmatmul.f32.gmra.mxu0 %v53
  %v108 = vpop.f32.mrf.mxu0
  %v109 = vadd.f32 0.0, %v108
  %110 = vmatmul.f32.gmra.mxu0 %v54
  %v111 = vpop.f32.mrf.mxu0
  %v112 = vadd.f32 0.0, %v111
  %113 = vmatmul.f32.gmra.mxu0 %v55
  %v114 = vpop.f32.mrf.mxu0
  %v115 = vadd.f32 0.0, %v114
  %116 = vmatmul.f32.gmra.mxu0 %v56
  %v117 = vpop.f32.mrf.mxu0
  %v118 = vadd.f32 0.0, %v117
  %119 = vmatmul.f32.gmra.mxu0 %v57
  %v120 = vpop.f32.mrf.mxu0
  %v121 = vadd.f32 0.0, %v120
  %122 = vmatmul.f32.gmra.mxu0 %v58
  %v123 = vpop.f32.mrf.mxu0
  %v124 = vadd.f32 0.0, %v123
  %125 = vmatmul.f32.gmra.mxu0 %v59
  %v126 = vpop.f32.mrf.mxu0
  %v127 = vadd.f32 0.0, %v126
  %128 = vmatmul.f32.gmra.mxu0 %v60
  %v129 = vpop.f32.mrf.mxu0
  %v130 = vadd.f32 0.0, %v129
  %131 = vmatmul.f32.gmra.mxu0 %v61
  %v132 = vpop.f32.mrf.mxu0
  %v133 = vadd.f32 0.0, %v132
  %134 = vmatmul.f32.gmra.mxu0 %v62
  %v135 = vpop.f32.mrf.mxu0
  %v136 = vadd.f32 0.0, %v135
  %137 = vmatmul.f32.gmra.mxu0 %v63
  %v138 = vpop.f32.mrf.mxu0
  %v139 = vadd.f32 0.0, %v138
  %140 = vmatmul.f32.gmra.mxu0 %v64
  %v141 = vpop.f32.mrf.mxu0
  %v142 = vadd.f32 0.0, %v141
  %143 = vmatmul.f32.gmra.mxu0 %v65
  %v144 = vpop.f32.mrf.mxu0
  %v145 = vadd.f32 0.0, %v144
  %146 = vdwg.mxu0
  %v147 = vadd.f32 %v34, %v100
  %v148 = vadd.f32 %v35, %v103
  %v149 = vadd.f32 %v36, %v106
  %v150 = vadd.f32 %v37, %v109
  %v151 = vadd.f32 %v38, %v112
  %v152 = vadd.f32 %v39, %v115
  %v153 = vadd.f32 %v40, %v118
  %v154 = vadd.f32 %v41, %v121
  %v155 = vadd.f32 %v42, %v124
  %v156 = vadd.f32 %v43, %v127
  %v157 = vadd.f32 %v44, %v130
  %v158 = vadd.f32 %v45, %v133
  %v159 = vadd.f32 %v46, %v136
  %v160 = vadd.f32 %v47, %v139
  %v161 = vadd.f32 %v48, %v142
  %v162 = vadd.f32 %v49, %v145
  %163 = vst [vmem:[#allocation2] sm:$0xff] %v147
  %164 = vst [vmem:[#allocation2 + $0x8] sm:$0xff] %v148
  %165 = vst [vmem:[#allocation2 + $0x10] sm:$0xff] %v149
  %166 = vst [vmem:[#allocation2 + $0x18] sm:$0xff] %v150
  %167 = vst [vmem:[#allocation2 + $0x20] sm:$0xff] %v151
  %168 = vst [vmem:[#allocation2 + $0x28] sm:$0xff] %v152
  %169 = vst [vmem:[#allocation2 + $0x30] sm:$0xff] %v153
  %170 = vst [vmem:[#allocation2 + $0x38] sm:$0xff] %v154
  %171 = vst [vmem:[#allocation2 + $0x40] sm:$0xff] %v155
  %172 = vst [vmem:[#allocation2 + $0x48] sm:$0xff] %v156
  %173 = vst [vmem:[#allocation2 + $0x50] sm:$0xff] %v157
  %174 = vst [vmem:[#allocation2 + $0x58] sm:$0xff] %v158
  %175 = vst [vmem:[#allocation2 + $0x60] sm:$0xff] %v159
  %176 = vst [vmem:[#allocation2 + $0x68] sm:$0xff] %v160
  %177 = vst [vmem:[#allocation2 + $0x70] sm:$0xff] %v161
  %178 = vst [vmem:[#allocation2 + $0x78] sm:$0xff] %v162
  // Predicated region
  $region18: #{gcn_forward.7} parent=0 // pred_check
    %p179 = pneg %p14
  $region19: #{gcn_forward.7} parent=0 // pred_check_branch
    %181 = sbr.rel (%p179) target = $region21
  $region20: #{gcn_forward.7} parent=0 // pred_region
    %v182 = vld [vmem:[#allocation2] sm:$0xff]
    %v183 = vld [vmem:[#allocation2 + $0x8] sm:$0xff]
    %v184 = vld [vmem:[#allocation2 + $0x10] sm:$0xff]
    %v185 = vld [vmem:[#allocation2 + $0x18] sm:$0xff]
    %v186 = vld [vmem:[#allocation2 + $0x20] sm:$0xff]
    %v187 = vld [vmem:[#allocation2 + $0x28] sm:$0xff]
    %v188 = vld [vmem:[#allocation2 + $0x30] sm:$0xff]
    %v189 = vld [vmem:[#allocation2 + $0x38] sm:$0xff]
    %v190 = vld [vmem:[#allocation2 + $0x40] sm:$0xff]
    %v191 = vld [vmem:[#allocation2 + $0x48] sm:$0xff]
    %v192 = vld [vmem:[#allocation2 + $0x50] sm:$0xff]
    %v193 = vld [vmem:[#allocation2 + $0x58] sm:$0xff]
    %v194 = vld [vmem:[#allocation2 + $0x60] sm:$0xff]
    %v195 = vld [vmem:[#allocation2 + $0x68] sm:$0xff]
    %v196 = vld [vmem:[#allocation2 + $0x70] sm:$0xff]
    %v197 = vld [vmem:[#allocation2 + $0x78] sm:$0xff]
    %v198 = vld [vmem:[%s2] sm:$0x1]
    %v200 = vperm.slane %v198, 0
    %v202 = vadd.f32 %v182, %v200
    %v203 = vadd.f32 %v183, %v200
    %v204 = vadd.f32 %v184, %v200
    %v205 = vadd.f32 %v185, %v200
    %v206 = vadd.f32 %v186, %v200
    %v207 = vadd.f32 %v187, %v200
    %v208 = vadd.f32 %v188, %v200
    %v209 = vadd.f32 %v189, %v200
    %v210 = vadd.f32 %v190, %v200
    %v211 = vadd.f32 %v191, %v200
    %v212 = vadd.f32 %v192, %v200
    %v213 = vadd.f32 %v193, %v200
    %v214 = vadd.f32 %v194, %v200
    %v215 = vadd.f32 %v195, %v200
    %v216 = vadd.f32 %v196, %v200
    %v217 = vadd.f32 %v197, %v200
    %218 = vst [vmem:[%s3] sm:$0xff] %v202
    %219 = vst [vmem:[%s3 + $0x8] sm:$0xff] %v203
    %220 = vst [vmem:[%s3 + $0x10] sm:$0xff] %v204
    %221 = vst [vmem:[%s3 + $0x18] sm:$0xff] %v205
    %222 = vst [vmem:[%s3 + $0x20] sm:$0xff] %v206
    %223 = vst [vmem:[%s3 + $0x28] sm:$0xff] %v207
    %224 = vst [vmem:[%s3 + $0x30] sm:$0xff] %v208
    %225 = vst [vmem:[%s3 + $0x38] sm:$0xff] %v209
    %226 = vst [vmem:[%s3 + $0x40] sm:$0xff] %v210
    %227 = vst [vmem:[%s3 + $0x48] sm:$0xff] %v211
    %228 = vst [vmem:[%s3 + $0x50] sm:$0xff] %v212
    %229 = vst [vmem:[%s3 + $0x58] sm:$0xff] %v213
    %230 = vst [vmem:[%s3 + $0x60] sm:$0xff] %v214
    %231 = vst [vmem:[%s3 + $0x68] sm:$0xff] %v215
    %232 = vst [vmem:[%s3 + $0x70] sm:$0xff] %v216
    %233 = vst [vmem:[%s3 + $0x78] sm:$0xff] %v217
  $region21: #{gcn_forward.7} parent=0 // pred_fallthru
    _
  // Predicated region
  $region22: #{gcn_forward.7} parent=0 // pred_check
    _
  $region23: #{gcn_forward.7} parent=0 // pred_check_branch
    %235 = sbr.rel (0) target = $region25
  $region24: #{gcn_forward.7} parent=0 // pred_region
    _
  $region25: #{gcn_forward.7} parent=0 // pred_fallthru
    _
  // Predicated region
  $region26: #{gcn_forward.7} parent=0 // pred_check
    _
  $region27: #{gcn_forward.7} parent=0 // pred_check_branch
    %237 = sbr.rel (0) target = $region29
  $region28: #{gcn_forward.7} parent=0 // pred_region
    _
  $region29: #{gcn_forward.7} parent=0 // pred_fallthru
    _

// kernel: gcn_forward.5
$region0: #{gcn_forward.5}
  #allocation0 [shape = 'u32[]', space=smem, size = 0x4, offset = 0x4, fixed_abs, tag = 'smem constant byte address 0x4 - core index']
  #allocation1 [shape = 'u32[72,128]{1,0:T(1,128)}', space=vmem, size = 0x9000, scoped, tag = 'internal scratch']
  #allocation2 [shape = 'f32[128,128]{1,0:T(8,128)}', space=vmem, size = 0x10000, scoped, tag = 'scratch operand']
  %s0 = inlined_call_operand.vmem [shape: f32[128,128], index: 0, kind: input, shape index: {}]
  %s1 = inlined_call_operand.vmem [shape: f32[128,128], index: 1, kind: input, shape index: {}]
  %s2 = inlined_call_operand.vmem [shape: f32[1,128], index: 2, kind: input, shape index: {}]
  %s3 = inlined_call_operand.vmem [shape: f32[128,128], index: 3, kind: output, shape index: {}]
  %s4 = sld [smem:[#allocation0]]
  $region30: #{gcn_forward.5} parent=0
    _
  %s6 = ssub.s32 1, %s4
  %s7 = scalar_select 0, %s6, %s4
  // Predicated region
  $region2: #{gcn_forward.5} parent=0 // pred_check
    _
  $region3: #{gcn_forward.5} parent=0 // pred_check_branch
    %9 = sbr.rel (0) target = $region5
  $region4: #{gcn_forward.5} parent=0 // pred_region
    _
  $region5: #{gcn_forward.5} parent=0 // pred_fallthru
    _
  // Predicated region
  $region6: #{gcn_forward.5} parent=0 // pred_check
    _
  $region7: #{gcn_forward.5} parent=0 // pred_check_branch
    %11 = sbr.rel (0) target = $region9
  $region8: #{gcn_forward.5} parent=0 // pred_region
    _
  $region9: #{gcn_forward.5} parent=0 // pred_fallthru
    _
  // Predicated region
  $region10: #{gcn_forward.5} parent=0 // pred_check
    _
  $region11: #{gcn_forward.5} parent=0 // pred_check_branch
    %13 = sbr.rel (0) target = $region13
  $region12: #{gcn_forward.5} parent=0 // pred_region
    _
  $region13: #{gcn_forward.5} parent=0 // pred_fallthru
    _
  %p14 = scmp.eq.s32.totalorder 0, 0
  // Predicated region
  $region14: #{gcn_forward.5} parent=0 // pred_check
    %p15 = pneg %p14
  $region15: #{gcn_forward.5} parent=0 // pred_check_branch
    %17 = sbr.rel (%p15) target = $region17
  $region16: #{gcn_forward.5} parent=0 // pred_region
    %18 = vst [vmem:[#allocation2] sm:$0xff] 0.0
    %19 = vst [vmem:[#allocation2 + $0x8] sm:$0xff] 0.0
    %20 = vst [vmem:[#allocation2 + $0x10] sm:$0xff] 0.0
    %21 = vst [vmem:[#allocation2 + $0x18] sm:$0xff] 0.0
    %22 = vst [vmem:[#allocation2 + $0x20] sm:$0xff] 0.0
    %23 = vst [vmem:[#allocation2 + $0x28] sm:$0xff] 0.0
    %24 = vst [vmem:[#allocation2 + $0x30] sm:$0xff] 0.0
    %25 = vst [vmem:[#allocation2 + $0x38] sm:$0xff] 0.0
    %26 = vst [vmem:[#allocation2 + $0x40] sm:$0xff] 0.0
    %27 = vst [vmem:[#allocation2 + $0x48] sm:$0xff] 0.0
    %28 = vst [vmem:[#allocation2 + $0x50] sm:$0xff] 0.0
    %29 = vst [vmem:[#allocation2 + $0x58] sm:$0xff] 0.0
    %30 = vst [vmem:[#allocation2 + $0x60] sm:$0xff] 0.0
    %31 = vst [vmem:[#allocation2 + $0x68] sm:$0xff] 0.0
    %32 = vst [vmem:[#allocation2 + $0x70] sm:$0xff] 0.0
    %33 = vst [vmem:[#allocation2 + $0x78] sm:$0xff] 0.0
  $region17: #{gcn_forward.5} parent=0 // pred_fallthru
    _
  %v34 = vld [vmem:[#allocation2] sm:$0xff]
  %v35 = vld [vmem:[#allocation2 + $0x8] sm:$0xff]
  %v36 = vld [vmem:[#allocation2 + $0x10] sm:$0xff]
  %v37 = vld [vmem:[#allocation2 + $0x18] sm:$0xff]
  %v38 = vld [vmem:[#allocation2 + $0x20] sm:$0xff]
  %v39 = vld [vmem:[#allocation2 + $0x28] sm:$0xff]
  %v40 = vld [vmem:[#allocation2 + $0x30] sm:$0xff]
  %v41 = vld [vmem:[#allocation2 + $0x38] sm:$0xff]
  %v42 = vld [vmem:[#allocation2 + $0x40] sm:$0xff]
  %v43 = vld [vmem:[#allocation2 + $0x48] sm:$0xff]
  %v44 = vld [vmem:[#allocation2 + $0x50] sm:$0xff]
  %v45 = vld [vmem:[#allocation2 + $0x58] sm:$0xff]
  %v46 = vld [vmem:[#allocation2 + $0x60] sm:$0xff]
  %v47 = vld [vmem:[#allocation2 + $0x68] sm:$0xff]
  %v48 = vld [vmem:[#allocation2 + $0x70] sm:$0xff]
  %v49 = vld [vmem:[#allocation2 + $0x78] sm:$0xff]
  %v50 = vld [vmem:[%s0] sm:$0xff]
  %v51 = vld [vmem:[%s0 + $0x8] sm:$0xff]
  %v52 = vld [vmem:[%s0 + $0x10] sm:$0xff]
  %v53 = vld [vmem:[%s0 + $0x18] sm:$0xff]
  %v54 = vld [vmem:[%s0 + $0x20] sm:$0xff]
  %v55 = vld [vmem:[%s0 + $0x28] sm:$0xff]
  %v56 = vld [vmem:[%s0 + $0x30] sm:$0xff]
  %v57 = vld [vmem:[%s0 + $0x38] sm:$0xff]
  %v58 = vld [vmem:[%s0 + $0x40] sm:$0xff]
  %v59 = vld [vmem:[%s0 + $0x48] sm:$0xff]
  %v60 = vld [vmem:[%s0 + $0x50] sm:$0xff]
  %v61 = vld [vmem:[%s0 + $0x58] sm:$0xff]
  %v62 = vld [vmem:[%s0 + $0x60] sm:$0xff]
  %v63 = vld [vmem:[%s0 + $0x68] sm:$0xff]
  %v64 = vld [vmem:[%s0 + $0x70] sm:$0xff]
  %v65 = vld [vmem:[%s0 + $0x78] sm:$0xff]
  %v66 = vld [vmem:[%s1] sm:$0xff]
  %v67 = vld [vmem:[%s1 + $0x8] sm:$0xff]
  %v68 = vld [vmem:[%s1 + $0x10] sm:$0xff]
  %v69 = vld [vmem:[%s1 + $0x18] sm:$0xff]
  %v70 = vld [vmem:[%s1 + $0x20] sm:$0xff]
  %v71 = vld [vmem:[%s1 + $0x28] sm:$0xff]
  %v72 = vld [vmem:[%s1 + $0x30] sm:$0xff]
  %v73 = vld [vmem:[%s1 + $0x38] sm:$0xff]
  %v74 = vld [vmem:[%s1 + $0x40] sm:$0xff]
  %v75 = vld [vmem:[%s1 + $0x48] sm:$0xff]
  %v76 = vld [vmem:[%s1 + $0x50] sm:$0xff]
  %v77 = vld [vmem:[%s1 + $0x58] sm:$0xff]
  %v78 = vld [vmem:[%s1 + $0x60] sm:$0xff]
  %v79 = vld [vmem:[%s1 + $0x68] sm:$0xff]
  %v80 = vld [vmem:[%s1 + $0x70] sm:$0xff]
  %v81 = vld [vmem:[%s1 + $0x78] sm:$0xff]
  %82 = vmatpush.msra.mxu0 %v81
  %83 = vmatpush.msra.mxu0 %v80
  %84 = vmatpush.msra.mxu0 %v79
  %85 = vmatpush.msra.mxu0 %v78
  %86 = vmatpush.msra.mxu0 %v77
  %87 = vmatpush.msra.mxu0 %v76
  %88 = vmatpush.msra.mxu0 %v75
  %89 = vmatpush.msra.mxu0 %v74
  %90 = vmatpush.msra.mxu0 %v73
  %91 = vmatpush.msra.mxu0 %v72
  %92 = vmatpush.msra.mxu0 %v71
  %93 = vmatpush.msra.mxu0 %v70
  %94 = vmatpush.msra.mxu0 %v69
  %95 = vmatpush.msra.mxu0 %v68
  %96 = vmatpush.msra.mxu0 %v67
  %97 = vmatpush.msra.mxu0 %v66
  %98 = vmatmul.f32.gmra.mxu0 %v50
  %v99 = vpop.f32.mrf.mxu0
  %v100 = vadd.f32 0.0, %v99
  %101 = vmatmul.f32.gmra.mxu0 %v51
  %v102 = vpop.f32.mrf.mxu0
  %v103 = vadd.f32 0.0, %v102
  %104 = vmatmul.f32.gmra.mxu0 %v52
  %v105 = vpop.f32.mrf.mxu0
  %v106 = vadd.f32 0.0, %v105
  %107 = vmatmul.f32.gmra.mxu0 %v53
  %v108 = vpop.f32.mrf.mxu0
  %v109 = vadd.f32 0.0, %v108
  %110 = vmatmul.f32.gmra.mxu0 %v54
  %v111 = vpop.f32.mrf.mxu0
  %v112 = vadd.f32 0.0, %v111
  %113 = vmatmul.f32.gmra.mxu0 %v55
  %v114 = vpop.f32.mrf.mxu0
  %v115 = vadd.f32 0.0, %v114
  %116 = vmatmul.f32.gmra.mxu0 %v56
  %v117 = vpop.f32.mrf.mxu0
  %v118 = vadd.f32 0.0, %v117
  %119 = vmatmul.f32.gmra.mxu0 %v57
  %v120 = vpop.f32.mrf.mxu0
  %v121 = vadd.f32 0.0, %v120
  %122 = vmatmul.f32.gmra.mxu0 %v58
  %v123 = vpop.f32.mrf.mxu0
  %v124 = vadd.f32 0.0, %v123
  %125 = vmatmul.f32.gmra.mxu0 %v59
  %v126 = vpop.f32.mrf.mxu0
  %v127 = vadd.f32 0.0, %v126
  %128 = vmatmul.f32.gmra.mxu0 %v60
  %v129 = vpop.f32.mrf.mxu0
  %v130 = vadd.f32 0.0, %v129
  %131 = vmatmul.f32.gmra.mxu0 %v61
  %v132 = vpop.f32.mrf.mxu0
  %v133 = vadd.f32 0.0, %v132
  %134 = vmatmul.f32.gmra.mxu0 %v62
  %v135 = vpop.f32.mrf.mxu0
  %v136 = vadd.f32 0.0, %v135
  %137 = vmatmul.f32.gmra.mxu0 %v63
  %v138 = vpop.f32.mrf.mxu0
  %v139 = vadd.f32 0.0, %v138
  %140 = vmatmul.f32.gmra.mxu0 %v64
  %v141 = vpop.f32.mrf.mxu0
  %v142 = vadd.f32 0.0, %v141
  %143 = vmatmul.f32.gmra.mxu0 %v65
  %v144 = vpop.f32.mrf.mxu0
  %v145 = vadd.f32 0.0, %v144
  %146 = vdwg.mxu0
  %v147 = vadd.f32 %v34, %v100
  %v148 = vadd.f32 %v35, %v103
  %v149 = vadd.f32 %v36, %v106
  %v150 = vadd.f32 %v37, %v109
  %v151 = vadd.f32 %v38, %v112
  %v152 = vadd.f32 %v39, %v115
  %v153 = vadd.f32 %v40, %v118
  %v154 = vadd.f32 %v41, %v121
  %v155 = vadd.f32 %v42, %v124
  %v156 = vadd.f32 %v43, %v127
  %v157 = vadd.f32 %v44, %v130
  %v158 = vadd.f32 %v45, %v133
  %v159 = vadd.f32 %v46, %v136
  %v160 = vadd.f32 %v47, %v139
  %v161 = vadd.f32 %v48, %v142
  %v162 = vadd.f32 %v49, %v145
  %163 = vst [vmem:[#allocation2] sm:$0xff] %v147
  %164 = vst [vmem:[#allocation2 + $0x8] sm:$0xff] %v148
  %165 = vst [vmem:[#allocation2 + $0x10] sm:$0xff] %v149
  %166 = vst [vmem:[#allocation2 + $0x18] sm:$0xff] %v150
  %167 = vst [vmem:[#allocation2 + $0x20] sm:$0xff] %v151
  %168 = vst [vmem:[#allocation2 + $0x28] sm:$0xff] %v152
  %169 = vst [vmem:[#allocation2 + $0x30] sm:$0xff] %v153
  %170 = vst [vmem:[#allocation2 + $0x38] sm:$0xff] %v154
  %171 = vst [vmem:[#allocation2 + $0x40] sm:$0xff] %v155
  %172 = vst [vmem:[#allocation2 + $0x48] sm:$0xff] %v156
  %173 = vst [vmem:[#allocation2 + $0x50] sm:$0xff] %v157
  %174 = vst [vmem:[#allocation2 + $0x58] sm:$0xff] %v158
  %175 = vst [vmem:[#allocation2 + $0x60] sm:$0xff] %v159
  %176 = vst [vmem:[#allocation2 + $0x68] sm:$0xff] %v160
  %177 = vst [vmem:[#allocation2 + $0x70] sm:$0xff] %v161
  %178 = vst [vmem:[#allocation2 + $0x78] sm:$0xff] %v162
  // Predicated region
  $region18: #{gcn_forward.5} parent=0 // pred_check
    %p179 = pneg %p14
  $region19: #{gcn_forward.5} parent=0 // pred_check_branch
    %181 = sbr.rel (%p179) target = $region21
  $region20: #{gcn_forward.5} parent=0 // pred_region
    %v182 = vld [vmem:[#allocation2] sm:$0xff]
    %v183 = vld [vmem:[#allocation2 + $0x8] sm:$0xff]
    %v184 = vld [vmem:[#allocation2 + $0x10] sm:$0xff]
    %v185 = vld [vmem:[#allocation2 + $0x18] sm:$0xff]
    %v186 = vld [vmem:[#allocation2 + $0x20] sm:$0xff]
    %v187 = vld [vmem:[#allocation2 + $0x28] sm:$0xff]
    %v188 = vld [vmem:[#allocation2 + $0x30] sm:$0xff]
    %v189 = vld [vmem:[#allocation2 + $0x38] sm:$0xff]
    %v190 = vld [vmem:[#allocation2 + $0x40] sm:$0xff]
    %v191 = vld [vmem:[#allocation2 + $0x48] sm:$0xff]
    %v192 = vld [vmem:[#allocation2 + $0x50] sm:$0xff]
    %v193 = vld [vmem:[#allocation2 + $0x58] sm:$0xff]
    %v194 = vld [vmem:[#allocation2 + $0x60] sm:$0xff]
    %v195 = vld [vmem:[#allocation2 + $0x68] sm:$0xff]
    %v196 = vld [vmem:[#allocation2 + $0x70] sm:$0xff]
    %v197 = vld [vmem:[#allocation2 + $0x78] sm:$0xff]
    %v198 = vld [vmem:[%s2] sm:$0x1]
    %v200 = vperm.slane %v198, 0
    %v202 = vadd.f32 %v182, %v200
    %v203 = vadd.f32 %v183, %v200
    %v204 = vadd.f32 %v184, %v200
    %v205 = vadd.f32 %v185, %v200
    %v206 = vadd.f32 %v186, %v200
    %v207 = vadd.f32 %v187, %v200
    %v208 = vadd.f32 %v188, %v200
    %v209 = vadd.f32 %v189, %v200
    %v210 = vadd.f32 %v190, %v200
    %v211 = vadd.f32 %v191, %v200
    %v212 = vadd.f32 %v192, %v200
    %v213 = vadd.f32 %v193, %v200
    %v214 = vadd.f32 %v194, %v200
    %v215 = vadd.f32 %v195, %v200
    %v216 = vadd.f32 %v196, %v200
    %v217 = vadd.f32 %v197, %v200
    %v218 = vmax.f32 %v202, 0.0
    %v219 = vmax.f32 %v203, 0.0
    %v220 = vmax.f32 %v204, 0.0
    %v221 = vmax.f32 %v205, 0.0
    %v222 = vmax.f32 %v206, 0.0
    %v223 = vmax.f32 %v207, 0.0
    %v224 = vmax.f32 %v208, 0.0
    %v225 = vmax.f32 %v209, 0.0
    %v226 = vmax.f32 %v210, 0.0
    %v227 = vmax.f32 %v211, 0.0
    %v228 = vmax.f32 %v212, 0.0
    %v229 = vmax.f32 %v213, 0.0
    %v230 = vmax.f32 %v214, 0.0
    %v231 = vmax.f32 %v215, 0.0
    %v232 = vmax.f32 %v216, 0.0
    %v233 = vmax.f32 %v217, 0.0
    %234 = vst [vmem:[%s3] sm:$0xff] %v218
    %235 = vst [vmem:[%s3 + $0x8] sm:$0xff] %v219
    %236 = vst [vmem:[%s3 + $0x10] sm:$0xff] %v220
    %237 = vst [vmem:[%s3 + $0x18] sm:$0xff] %v221
    %238 = vst [vmem:[%s3 + $0x20] sm:$0xff] %v222
    %239 = vst [vmem:[%s3 + $0x28] sm:$0xff] %v223
    %240 = vst [vmem:[%s3 + $0x30] sm:$0xff] %v224
    %241 = vst [vmem:[%s3 + $0x38] sm:$0xff] %v225
    %242 = vst [vmem:[%s3 + $0x40] sm:$0xff] %v226
    %243 = vst [vmem:[%s3 + $0x48] sm:$0xff] %v227
    %244 = vst [vmem:[%s3 + $0x50] sm:$0xff] %v228
    %245 = vst [vmem:[%s3 + $0x58] sm:$0xff] %v229
    %246 = vst [vmem:[%s3 + $0x60] sm:$0xff] %v230
    %247 = vst [vmem:[%s3 + $0x68] sm:$0xff] %v231
    %248 = vst [vmem:[%s3 + $0x70] sm:$0xff] %v232
    %249 = vst [vmem:[%s3 + $0x78] sm:$0xff] %v233
  $region21: #{gcn_forward.5} parent=0 // pred_fallthru
    _
  // Predicated region
  $region22: #{gcn_forward.5} parent=0 // pred_check
    _
  $region23: #{gcn_forward.5} parent=0 // pred_check_branch
    %251 = sbr.rel (0) target = $region25
  $region24: #{gcn_forward.5} parent=0 // pred_region
    _
  $region25: #{gcn_forward.5} parent=0 // pred_fallthru
    _
  // Predicated region
  $region26: #{gcn_forward.5} parent=0 // pred_check
    _
  $region27: #{gcn_forward.5} parent=0 // pred_check_branch
    %253 = sbr.rel (0) target = $region29
  $region28: #{gcn_forward.5} parent=0 // pred_region
    _
  $region29: #{gcn_forward.5} parent=0 // pred_fallthru
    _

</llo_original>
